<compile_context>
chip_gen: v5e
topology: v5e:2x2
jax: 0.10.0
libtpu: 0.0.40
codegen_flags: <defaults>
</compile_context>

<pallas_src>
import jax
import jax.numpy as jnp
from jax.experimental import pallas as pl
from jax.experimental.pallas import tpu as pltpu


def _round_up(x, m):
    return (x + m - 1) // m * m


def _cdiv(a, b):
    return -(-a // b)


def _vmem_capacity_bytes():
    try:
        return int(pltpu.get_tpu_info().vmem_capacity_bytes)
    except Exception:
        return 64 * 1024 * 1024  # conservative fallback (v7x per-TC VMEM)


def _tv_candidates(v_pad):
    """Descending vocab-tile candidates: multiples of 256 (or v_pad itself for
    small vocabs) that divide v_pad, so the grid never needs partial tiles."""
    cands = [v_pad] if v_pad <= 4096 else []
    for c in (4096, 2048, 1024, 512, 256):
        if c < v_pad and v_pad % c == 0:
            cands.append(c)
    return cands or [v_pad]


def _pick_tiles(m, hidden, v_pad, budget, max_tv=None):
    """Pick (tm, tv, vmem_need_bytes).

    tm: row tile, multiple of 16, up to 512, split so the parallel row axis has
        >= 2 tiles when possible (v7x megacore).
    tv: multiple of 256 (or v_pad for small vocabs) dividing v_pad, as large as
        the per-core VMEM budget allows.
    """
    def need(tm_, tv_):
        return (2 * tm_ * hidden * 4        # x tile (f32, double-buffered)
                + 2 * hidden * tv_ * 2      # weight tile (bf16, double-buffered)
                + 2 * tm_ * tv_ * 4         # logits out tile (f32, double-buffered)
                + 4 * tm_ * 128 * 4         # lse out + m/l scratch (lane-padded)
                + (2 << 20))                # slack

    cands = _tv_candidates(v_pad)
    if max_tv is not None:
        capped = [c for c in cands if c <= max_tv]
        cands = capped or [cands[-1]]

    tm = min(512, _round_up(max(m, 1), 16))
    # Megacore: give the "parallel" row axis at least two tiles when m allows.
    if _cdiv(m, tm) < 2 <= _cdiv(m, 16):
        tm = _round_up(_cdiv(m, 2), 16)

    while True:
        for tv in cands:
            if need(tm, tv) <= budget:
                return tm, tv, need(tm, tv)
        if tm <= 16:
            tv = cands[-1]
            return tm, tv, need(tm, tv)
        tm = max(16, _round_up(tm // 2, 16))


def _make_generator_kernel(vocab, v_pad, tv):
    needs_mask = v_pad != vocab

    def kernel(x_ref, wt_ref, logits_ref, lse_ref, m_ref, l_ref):
        # x_ref      : (tm, H)   activation tile (input dtype; cast to bf16 here)
        # wt_ref     : (H, tv)   bf16 weight tile (streamed over vocab)
        # logits_ref : (tm, tv)  raw f32 logits tile -> HBM (lane-dense)
        # lse_ref    : (tm, 1)   per-row log-sum-exp (written on last vocab step)
        # m_ref/l_ref: (tm, 1)   running max / sum-exp scratch (f32)
        j = pl.program_id(1)

        @pl.when(j == 0)
        def _init():
            m_ref[...] = jnp.full_like(m_ref, -jnp.inf)
            l_ref[...] = jnp.zeros_like(l_ref)

        # MXU: bf16 operands, f32 accumulation.
        logits = jnp.dot(x_ref[...].astype(jnp.bfloat16), wt_ref[...],
                         preferred_element_type=jnp.float32)      # (tm, tv)

        if needs_mask:
            col = j * tv + jax.lax.broadcasted_iota(jnp.int32, logits.shape, 1)
            masked = jnp.where(col < vocab, logits, -jnp.inf)
        else:
            masked = logits

        # Online max / sum-exp across vocab tiles (f32).  The first vocab tile
        # always contains real columns, so m_new is finite from step 0 on.
        m_prev = m_ref[...]
        m_new = jnp.maximum(m_prev, jnp.max(masked, axis=-1, keepdims=True))
        l_ref[...] = (l_ref[...] * jnp.exp(m_prev - m_new)
                      + jnp.sum(jnp.exp(masked - m_new), axis=-1, keepdims=True))
        m_ref[...] = m_new

        # Raw logits go straight to HBM (each tile written exactly once).
        logits_ref[...] = logits

        @pl.when(j == pl.num_programs(1) - 1)
        def _finalize():
            lse_ref[...] = m_ref[...] + jnp.log(l_ref[...])

    return kernel


def prepare_generator_weight(weight, compute_dtype=jnp.bfloat16):
    """One-time weight prep (hoisted out of the per-step path).

    weight: [vocab, hidden]  (PyTorch nn.Linear layout, no bias)
    Returns (wt, vocab): wt is [hidden, v_pad] in `compute_dtype`, with the
    vocab axis zero-padded to an MXU/DMA-friendly multiple (up to 1024,
    <= ~6% waste) so large vocab tiles always divide it evenly.
    """
    vocab, _hidden = weight.shape
    v_pad = _round_up(vocab, 128)
    for align in (1024, 512, 256, 128):
        cand = _round_up(vocab, align)
        if cand - vocab <= max(vocab // 16, 64) or align == 128:
            v_pad = cand
            break
    wt = weight.T.astype(compute_dtype)
    if v_pad != vocab:
        wt = jnp.pad(wt, ((0, 0), (0, v_pad - vocab)))
    return wt, vocab


def generator_forward(x, wt, vocab, *, out_dtype=jnp.float32, max_tv=None):
    """log_softmax(x @ W^T, axis=-1).

    x     : [..., hidden]   (any float dtype; cast to bf16 inside the kernel)
    wt    : [hidden, v_pad] prepared by prepare_generator_weight
    vocab : true vocab size (<= v_pad)
    max_tv: optional cap on the vocab tile (testing / tuning hook)
    """
    orig_shape = x.shape
    hidden = orig_shape[-1]
    v_pad = wt.shape[1]
    assert wt.shape[0] == hidden and v_pad % 128 == 0 and v_pad >= vocab

    x2d = x.reshape(-1, hidden)          # no dtype cast here (done in-kernel)
    m = x2d.shape[0]

    vmem_cap = _vmem_capacity_bytes()
    budget = int(vmem_cap * 0.85)
    tm, tv, need = _pick_tiles(m, hidden, v_pad, budget, max_tv=max_tv)

    m_pad = _round_up(m, tm)
    if m_pad != m:
        # Single XLA pad, only when the row count is ragged.
        x2d = jnp.pad(x2d, ((0, m_pad - m), (0, 0)))

    grid = (m_pad // tm, v_pad // tv)

    x_bytes = x2d.dtype.itemsize
    w_bytes = wt.dtype.itemsize
    cost = pl.CostEstimate(
        flops=2 * m_pad * hidden * v_pad,
        transcendentals=m_pad * v_pad,
        bytes_accessed=(m_pad * hidden * x_bytes
                        + grid[0] * hidden * v_pad * w_bytes
                        + m_pad * v_pad * 4
                        + m_pad * 4),
    )

    logits, lse = pl.pallas_call(
        _make_generator_kernel(vocab, v_pad, tv),
        out_shape=(jax.ShapeDtypeStruct((m_pad, v_pad), jnp.float32),
                   jax.ShapeDtypeStruct((m_pad, 1), jnp.float32)),
        grid_spec=pltpu.PrefetchScalarGridSpec(
            num_scalar_prefetch=0,
            grid=grid,
            in_specs=[
                pl.BlockSpec((tm, hidden), lambda i, j: (i, 0)),
                pl.BlockSpec((hidden, tv), lambda i, j: (0, j)),
            ],
            out_specs=[
                pl.BlockSpec((tm, tv), lambda i, j: (i, j)),
                pl.BlockSpec((tm, 1), lambda i, j: (i, 0)),
            ],
            scratch_shapes=[
                pltpu.VMEM((tm, 1), jnp.float32),   # running max
                pltpu.VMEM((tm, 1), jnp.float32),   # running sum-exp
            ],
        ),
        compiler_params=pltpu.CompilerParams(
            dimension_semantics=("parallel", "arbitrary"),
            vmem_limit_bytes=int(min(vmem_cap,
                                     max(32 * 1024 * 1024,
                                         need + 8 * 1024 * 1024))),
        ),
        cost_estimate=cost,
    )(x2d, wt)

    # Finalize: one fused element-wise XLA op (slice + subtract + cast).
    # Raw logits are kept in f32 until after the lse subtraction so the
    # log-probs are not degraded by a bf16 round-trip.
    out = (logits[:m, :vocab] - lse[:m]).astype(out_dtype)
    return out.reshape(*orig_shape[:-1], vocab)


if __name__ == "__main__":
    key = jax.random.PRNGKey(0)

    def reference(x, weight):
        h = x.shape[-1]
        logits = jnp.dot(x.reshape(-1, h).astype(jnp.bfloat16),
                         weight.T.astype(jnp.bfloat16),
                         preferred_element_type=jnp.float32)
        out = jax.nn.log_softmax(logits, axis=-1)
        return out.reshape(*x.shape[:-1], weight.shape[0])

    def run_case(case_key, batch, seq, hidden, vocab, max_tv=None):
        kx, kw = jax.random.split(case_key)
        bound = 1.0 / (hidden ** 0.5)
        weight = jax.random.uniform(kw, (vocab, hidden), minval=-bound,
                                    maxval=bound, dtype=jnp.float32)
        x = jax.random.normal(kx, (batch, seq, hidden), dtype=jnp.float32)

        wt, v = prepare_generator_weight(weight)          # one-time prep
        out = jax.block_until_ready(generator_forward(x, wt, v, max_tv=max_tv))
        ref = reference(x, weight)

        assert out.shape == (batch, seq, vocab) and out.dtype == jnp.float32
        err = float(jnp.max(jnp.abs(out - ref)))
        assert err < 2e-3, err
        assert jnp.allclose(jnp.sum(jnp.exp(out), axis=-1), 1.0, atol=1e-3)

    k1, k2, k3 = jax.random.split(key, 3)
    # 1) Small reference shape (vocab multiple of 128, exact rows).
    run_case(k1, batch=2, seq=8, hidden=32, vocab=128)
    # 2) Ragged rows (M=5) + ragged vocab (100): row padding + column masking.
    run_case(k2, batch=1, seq=5, hidden=32, vocab=100)
    # 3) Multiple row tiles (megacore split) + multiple vocab tiles + masking.
    run_case(k3, batch=5, seq=8, hidden=64, vocab=500, max_tv=256)

    print("KERNEL_OK")
</pallas_src>

<mosaic_0001>
module attributes {stable_mosaic.version = 11 : i64} {
  func.func @kernel(%arg0: i32, %arg1: i32, %arg2: memref<16x32xf32, #tpu.memory_space<vmem>>, %arg3: memref<32x128xbf16, #tpu.memory_space<vmem>>, %arg4: memref<16x128xf32, #tpu.memory_space<vmem>>, %arg5: memref<16x1xf32, #tpu.memory_space<vmem>>, %arg6: memref<16x1xf32, #tpu.memory_space<vmem>>, %arg7: memref<16x1xf32, #tpu.memory_space<vmem>>) attributes {dimension_semantics = [#tpu.dimension_semantics<parallel>, #tpu.dimension_semantics<arbitrary>], iteration_bounds = array<i64: 1, 1>, scalar_prefetch = 0 : i64, scratch_operands = 2 : i64, tpu.core_type = #tpu.core_type<tc>, window_params = [{transform_indices = @transform_0, window_bounds = array<i64: 16, 32>}, {transform_indices = @transform_1, window_bounds = array<i64: 32, 128>}, {transform_indices = @transform_2, window_bounds = array<i64: 16, 128>}, {transform_indices = @transform_3, window_bounds = array<i64: 16, 1>}]} {
    %c0_i32 = arith.constant 0 : i32
    %0 = arith.cmpi eq, %arg1, %c0_i32 : i32
    %1 = arith.extui %0 : i1 to i32
    %c0_i32_0 = arith.constant 0 : i32
    %2 = arith.cmpi ne, %1, %c0_i32_0 : i32
    scf.if %2 {
      %cst_18 = arith.constant 0xFF800000 : f32
      %27 = vector.broadcast %cst_18 : f32 to vector<16x1xf32>
      %c0_19 = arith.constant 0 : index
      %c0_20 = arith.constant 0 : index
      %28 = vector.load %arg6[%c0_19, %c0_20] : memref<16x1xf32, #tpu.memory_space<vmem>>, vector<16x1xf32>
      tpu.vector_store %arg6[%c0_19, %c0_20], %27 {strides = array<i32>} : memref<16x1xf32, #tpu.memory_space<vmem>>, vector<16x1xf32>,
      %cst_21 = arith.constant 0.000000e+00 : f32
      %29 = vector.broadcast %cst_21 : f32 to vector<16x1xf32>
      %c0_22 = arith.constant 0 : index
      %c0_23 = arith.constant 0 : index
      %30 = vector.load %arg7[%c0_22, %c0_23] : memref<16x1xf32, #tpu.memory_space<vmem>>, vector<16x1xf32>
      tpu.vector_store %arg7[%c0_22, %c0_23], %29 {strides = array<i32>} : memref<16x1xf32, #tpu.memory_space<vmem>>, vector<16x1xf32>,
    } else {
    }
    %c0 = arith.constant 0 : index
    %c0_1 = arith.constant 0 : index
    %3 = vector.load %arg2[%c0, %c0_1] : memref<16x32xf32, #tpu.memory_space<vmem>>, vector<16x32xf32>
    %4 = arith.truncf %3 : vector<16x32xf32> to vector<16x32xbf16>
    %c0_2 = arith.constant 0 : index
    %c0_3 = arith.constant 0 : index
    %5 = vector.load %arg3[%c0_2, %c0_3] : memref<32x128xbf16, #tpu.memory_space<vmem>>, vector<32x128xbf16>
    %cst = arith.constant dense<0.000000e+00> : vector<16x128xf32>
    %6 = tpu.matmul %4, %5, %cst {dimension_numbers = #tpu.dot_dimension_numbers<[1], [0], [0], [1], [0, 0, 1, 1], [], []>} : vector<16x32xbf16>, vector<32x128xbf16>, vector<16x128xf32> -> vector<16x128xf32>
    %c0_4 = arith.constant 0 : index
    %c0_5 = arith.constant 0 : index
    %7 = vector.load %arg6[%c0_4, %c0_5] : memref<16x1xf32, #tpu.memory_space<vmem>>, vector<16x1xf32>
    %cst_6 = arith.constant dense<0xFF800000> : vector<16xf32>
    %8 = vector.multi_reduction <maximumf>, %6, %cst_6 [1] : vector<16x128xf32> to vector<16xf32>
    %9 = vector.shape_cast %8 : vector<16xf32> to vector<16x1xf32>
    %10 = arith.maximumf %7, %9 : vector<16x1xf32>
    %c0_7 = arith.constant 0 : index
    %c0_8 = arith.constant 0 : index
    %11 = vector.load %arg7[%c0_7, %c0_8] : memref<16x1xf32, #tpu.memory_space<vmem>>, vector<16x1xf32>
    %12 = arith.subf %7, %10 : vector<16x1xf32>
    %13 = math.exp %12 : vector<16x1xf32>
    %14 = arith.mulf %11, %13 : vector<16x1xf32>
    %15 = vector.broadcast %10 : vector<16x1xf32> to vector<16x128xf32>
    %16 = arith.subf %6, %15 : vector<16x128xf32>
    %17 = math.exp %16 : vector<16x128xf32>
    %cst_9 = arith.constant dense<0.000000e+00> : vector<16xf32>
    %18 = vector.multi_reduction <add>, %17, %cst_9 [1] : vector<16x128xf32> to vector<16xf32>
    %19 = vector.shape_cast %18 : vector<16xf32> to vector<16x1xf32>
    %20 = arith.addf %14, %19 : vector<16x1xf32>
    %c0_10 = arith.constant 0 : index
    %c0_11 = arith.constant 0 : index
    %21 = vector.load %arg7[%c0_10, %c0_11] : memref<16x1xf32, #tpu.memory_space<vmem>>, vector<16x1xf32>
    tpu.vector_store %arg7[%c0_10, %c0_11], %20 {strides = array<i32>} : memref<16x1xf32, #tpu.memory_space<vmem>>, vector<16x1xf32>,
    %c0_12 = arith.constant 0 : index
    %c0_13 = arith.constant 0 : index
    %22 = vector.load %arg6[%c0_12, %c0_13] : memref<16x1xf32, #tpu.memory_space<vmem>>, vector<16x1xf32>
    tpu.vector_store %arg6[%c0_12, %c0_13], %10 {strides = array<i32>} : memref<16x1xf32, #tpu.memory_space<vmem>>, vector<16x1xf32>,
    %c0_14 = arith.constant 0 : index
    %c0_15 = arith.constant 0 : index
    %23 = vector.load %arg4[%c0_14, %c0_15] : memref<16x128xf32, #tpu.memory_space<vmem>>, vector<16x128xf32>
    tpu.vector_store %arg4[%c0_14, %c0_15], %6 {strides = array<i32>} : memref<16x128xf32, #tpu.memory_space<vmem>>, vector<16x128xf32>,
    %c0_i32_16 = arith.constant 0 : i32
    %24 = arith.cmpi eq, %arg1, %c0_i32_16 : i32
    %25 = arith.extui %24 : i1 to i32
    %c0_i32_17 = arith.constant 0 : i32
    %26 = arith.cmpi ne, %25, %c0_i32_17 : i32
    scf.if %26 {
      %c0_18 = arith.constant 0 : index
      %c0_19 = arith.constant 0 : index
      %27 = vector.load %arg6[%c0_18, %c0_19] : memref<16x1xf32, #tpu.memory_space<vmem>>, vector<16x1xf32>
      %c0_20 = arith.constant 0 : index
      %c0_21 = arith.constant 0 : index
      %28 = vector.load %arg7[%c0_20, %c0_21] : memref<16x1xf32, #tpu.memory_space<vmem>>, vector<16x1xf32>
      %29 = math.log %28 : vector<16x1xf32>
      %30 = arith.addf %27, %29 : vector<16x1xf32>
      %c0_22 = arith.constant 0 : index
      %c0_23 = arith.constant 0 : index
      %31 = vector.load %arg5[%c0_22, %c0_23] : memref<16x1xf32, #tpu.memory_space<vmem>>, vector<16x1xf32>
      tpu.vector_store %arg5[%c0_22, %c0_23], %30 {strides = array<i32>} : memref<16x1xf32, #tpu.memory_space<vmem>>, vector<16x1xf32>,
    } else {
    }
    return
  }
  func.func @transform_0(%arg0: i32, %arg1: i32) -> (i32, i32) {
    %c0_i32 = arith.constant 0 : i32
    %c0_i32_0 = arith.constant 0 : i32
    return %arg0, %c0_i32 : i32, i32
  }
  func.func @transform_1(%arg0: i32, %arg1: i32) -> (i32, i32) {
    %c0_i32 = arith.constant 0 : i32
    %c0_i32_0 = arith.constant 0 : i32
    return %c0_i32, %arg1 : i32, i32
  }
  func.func @transform_2(%arg0: i32, %arg1: i32) -> (i32, i32) {
    %c0_i32 = arith.constant 0 : i32
    return %arg0, %arg1 : i32, i32
  }
  func.func @transform_3(%arg0: i32, %arg1: i32) -> (i32, i32) {
    %c0_i32 = arith.constant 0 : i32
    %c0_i32_0 = arith.constant 0 : i32
    return %arg0, %c0_i32 : i32, i32
  }
}

</mosaic_0001>

<llo_original>
// kernel: tpu_custom_call.1
$region0: #{tpu_custom_call.1}
  #allocation0 [shape = 'u32[]', space=smem, size = 0x4, offset = 0x4, fixed_abs, tag = 'smem constant byte address 0x4 - core index']
  #allocation1 [shape = 'u32[72,128]{1,0:T(1,128)}', space=vmem, size = 0x9000, scoped, tag = 'internal scratch']
  #allocation2 [shape = 'f32[16,1]{1,0:T(8,128)}', space=vmem, size = 0x2000, scoped, tag = 'scratch operand']
  #allocation3 [shape = 'f32[16,1]{1,0:T(8,128)}', space=vmem, size = 0x2000, scoped, tag = 'scratch operand']
  %s0 = inlined_call_operand.hbm [shape: f32[16,32], index: 0, kind: input, shape index: {}]
  %s1 = inlined_call_operand.hbm [shape: bf16[32,128], index: 1, kind: input, shape index: {}]
  %s2 = inlined_call_operand.hbm [shape: f32[16,128], index: 2, kind: output, shape index: {0}]
  %s3 = inlined_call_operand.vmem [shape: f32[16,1], index: 3, kind: output, shape index: {1}]
  %4 = xla_tuple %s2, %s3
  %s5 = sld [smem:[#allocation0]]
  $region42: #{tpu_custom_call.1} parent=0
    _
  %s7 = ssub.s32 1, %s5
  %s8 = scalar_select 0, %s7, %s5
  $region1: #{tpu_custom_call.1} parent=0
    #allocation4 [shape = 'u8[8192]{0}', space=vmem, size = 0x2000, scoped, tag = 'input window, operand 0, single buffered']
    #allocation5 [shape = 's32[1]{0}', space=sflag, size = 0x4, scoped, tag = 'scoped memory for tpu_custom_call.1']
    #allocation6 [shape = 's32[1]{0}', space=sflag, size = 0x4, scoped, tag = 'scoped memory for tpu_custom_call.1']
    #allocation7 [shape = 'u8[8192]{0}', space=vmem, size = 0x2000, scoped, tag = 'input window, operand 1, single buffered']
    #allocation8 [shape = 's32[1]{0}', space=sflag, size = 0x4, scoped, tag = 'scoped memory for tpu_custom_call.1']
    #allocation9 [shape = 'u8[8192]{0}', space=vmem, size = 0x2000, scoped, tag = 'output window, operand 0, single buffered']
    %9 = vsyncpa [#allocation5], 0
    %10 = vsyncpa [#allocation8], 0
    %11 = vsyncpa [#allocation6], 0
    // Predicated region
    $region2: #{tpu_custom_call.1} parent=1 // pred_check
      _
    $region3: #{tpu_custom_call.1} parent=1 // pred_check_branch
      %13 = sbr.rel (0) target = $region5
    $region4: #{tpu_custom_call.1} parent=1 // pred_region
      %15 = vsyncadd [#allocation5], 0
      %s16 = sshll.u32 %s0, 4
      %s17 = int_to_ptr.hbm [resolvable:$true] %s16
      %s18 = sshll.u32 [#allocation4], 4
      %s19 = int_to_ptr.vmem [resolvable:$true] %s18
      %24 = dma.hbm_to_vmem [thread:$0]  %s17, 256, %s19, [#allocation5], 128, 128, 8
    $region5: #{tpu_custom_call.1} parent=1 // pred_fallthru
      _
    // Predicated region
    $region6: #{tpu_custom_call.1} parent=1 // pred_check
      _
    $region7: #{tpu_custom_call.1} parent=1 // pred_check_branch
      %26 = sbr.rel (0) target = $region9
    $region8: #{tpu_custom_call.1} parent=1 // pred_region
      %28 = vsyncadd [#allocation8], 0
      %s29 = sshll.u32 %s1, 4
      %s30 = int_to_ptr.hbm [resolvable:$true] %s29
      %s31 = sshll.u32 [#allocation7], 4
      %s32 = int_to_ptr.vmem [resolvable:$true] %s31
      %37 = dma.hbm_to_vmem [thread:$0]  %s30, 256, %s32, [#allocation8], 64, 64, 4
    $region9: #{tpu_custom_call.1} parent=1 // pred_fallthru
      _
    // Predicated region
    $region10: #{tpu_custom_call.1} parent=1 // pred_check
      _
    $region11: #{tpu_custom_call.1} parent=1 // pred_check_branch
      %39 = sbr.rel (0) target = $region13
    $region12: #{tpu_custom_call.1} parent=1 // pred_region
      %41 = dma.done [#allocation5], 256
    $region13: #{tpu_custom_call.1} parent=1 // pred_fallthru
      _
    // Predicated region
    $region14: #{tpu_custom_call.1} parent=1 // pred_check
      _
    $region15: #{tpu_custom_call.1} parent=1 // pred_check_branch
      %43 = sbr.rel (0) target = $region17
    $region16: #{tpu_custom_call.1} parent=1 // pred_region
      %45 = dma.done [#allocation8], 256
    $region17: #{tpu_custom_call.1} parent=1 // pred_fallthru
      _
    %p47 = scmp.eq.s32.totalorder 0, 0
    // Predicated region
    $region18: #{tpu_custom_call.1} parent=1 // pred_check
      %p48 = pneg %p47
    $region19: #{tpu_custom_call.1} parent=1 // pred_check_branch
      %50 = sbr.rel (%p48) target = $region21
    $region20: #{tpu_custom_call.1} parent=1 // pred_region
      %vm51 = vcmask 7168
      %52 = vst.msk [vmem:[#allocation2] sm:$0xff] %vm51, -inf
      %53 = vst.msk [vmem:[#allocation2 + $0x8] sm:$0xff] %vm51, -inf
      %54 = vst.msk [vmem:[#allocation3] sm:$0xff] %vm51, 0.0
      %55 = vst.msk [vmem:[#allocation3 + $0x8] sm:$0xff] %vm51, 0.0
    $region21: #{tpu_custom_call.1} parent=1 // pred_fallthru
      _
    %v56 = vld [vmem:[#allocation4] sm:$0xff]
    %v57 = vld [vmem:[#allocation4 + $0x8] sm:$0xff]
    %v58 = vpack.c.bf16 %v57, %v56
    %v59 = vld [vmem:[#allocation7] sm:$0xf]
    %v60 = vld [vmem:[#allocation7 + $0x4] sm:$0xf]
    %v61 = vld [vmem:[#allocation7 + $0x8] sm:$0xf]
    %v62 = vld [vmem:[#allocation7 + $0xc] sm:$0xf]
    %v67 = vunpack.c.l.b16 %v59
    %v68 = vunpack.c.l.b16 %v60
    %v69 = vunpack.c.l.b16 %v61
    %v70 = vunpack.c.l.b16 %v62
    %v71 = vpack.c.b16 %v68, %v67
    %v72 = vpack.c.b16 %v70, %v69
    %vm75 = vcmask 261120
    %v77 = vsel %vm75, %v58, 0
    %79 = vmatpush.bf16.msra.mxu0 0
    %80 = vmatpush.bf16.msra.mxu0 0
    %81 = vmatpush.bf16.msra.mxu0 0
    %82 = vmatpush.bf16.msra.mxu0 0
    %83 = vmatpush.bf16.msra.mxu0 0
    %84 = vmatpush.bf16.msra.mxu0 0
    %85 = vmatpush.bf16.msra.mxu0 %v72
    %86 = vmatpush.bf16.msra.mxu0 %v71
    %87 = vmatmul.bf16.gmra.mxu0 %v77
    %v88 = vpop.f32.mrf.mxu0
    %v89 = vadd.f32 0.0, %v88
    %v90 = vpop.f32.mrf.mxu0
    %v91 = vadd.f32 0.0, %v90
    %92 = vdwg.mxu0
    %v93 = vld [vmem:[#allocation2] sm:$0xff]
    %v94 = vld [vmem:[#allocation2 + $0x8] sm:$0xff]
    %95 = vmax.xlane.f32.xlu0 %v89
    %v96 = vpop.xlane.xlu0 %95
    %97 = vmax.xlane.f32.xlu0 %v91
    %v98 = vpop.xlane.xlu0 %97
    %v99 = vmax.f32 %v93, %v96
    %v100 = vmax.f32 %v94, %v98
    %v101 = vld [vmem:[#allocation3] sm:$0xff]
    %v102 = vld [vmem:[#allocation3 + $0x8] sm:$0xff]
    %v103 = vsub.f32 %v93, %v99
    %v104 = vsub.f32 %v94, %v100
    %v105 = vmul.f32 %v103, 1.442695
    %v106 = vpow.pop %v105
    %v107 = vmul.f32 %v104, 1.442695
    %v108 = vpow.pop %v107
    %v109 = vmul.f32 %v101, %v106
    %v110 = vmul.f32 %v102, %v108
    %112 = vset.pattern.permute.xlu0 0
    %113 = vperm.xlu0 %112, %v99
    %v114 = vpop.permute.xlu0 %113
    %117 = vset.pattern.permute.xlu0 0
    %118 = vperm.xlu0 %117, %v100
    %v119 = vpop.permute.xlu0 %118
    %v121 = vsub.f32 %v89, %v114
    %v122 = vsub.f32 %v91, %v119
    %v123 = vmul.f32 %v121, 1.442695
    %v124 = vpow.pop %v123
    %v125 = vmul.f32 %v122, 1.442695
    %v126 = vpow.pop %v125
    %127 = vadd.xlane.f32.xlu0 %v124
    %v128 = vpop.xlane.xlu0 %127
    %129 = vadd.xlane.f32.xlu0 %v126
    %v130 = vpop.xlane.xlu0 %129
    %v131 = vadd.f32 %v109, %v128
    %v132 = vadd.f32 %v110, %v130
    %vm133 = vcmask 7168
    %134 = vst.msk [vmem:[#allocation3] sm:$0xff] %vm133, %v131
    %135 = vst.msk [vmem:[#allocation3 + $0x8] sm:$0xff] %vm133, %v132
    %136 = vst.msk [vmem:[#allocation2] sm:$0xff] %vm133, %v99
    %137 = vst.msk [vmem:[#allocation2 + $0x8] sm:$0xff] %vm133, %v100
    %138 = vst [vmem:[#allocation9] sm:$0xff] %v89
    %139 = vst [vmem:[#allocation9 + $0x8] sm:$0xff] %v91
    // Predicated region
    $region22: #{tpu_custom_call.1} parent=1 // pred_check
      %p140 = pneg %p47
    $region23: #{tpu_custom_call.1} parent=1 // pred_check_branch
      %142 = sbr.rel (%p140) target = $region25
    $region24: #{tpu_custom_call.1} parent=1 // pred_region
      %v143 = vld [vmem:[#allocation2] sm:$0xff]
      %v144 = vld [vmem:[#allocation2 + $0x8] sm:$0xff]
      %v145 = vld [vmem:[#allocation3] sm:$0xff]
      %v146 = vld [vmem:[#allocation3 + $0x8] sm:$0xff]
      %v147 = vlog2.pop %v145
      %v148 = vmul.f32 %v147, 0.6931472
      %v149 = vlog2.pop %v146
      %v150 = vmul.f32 %v149, 0.6931472
      %v151 = vadd.f32 %v143, %v148
      %v152 = vadd.f32 %v144, %v150
      %153 = vst.msk [vmem:[%s3] sm:$0xff] %vm133, %v151
      %154 = vst.msk [vmem:[%s3 + $0x8] sm:$0xff] %vm133, %v152
    $region25: #{tpu_custom_call.1} parent=1 // pred_fallthru
      _
    // Predicated region
    $region26: #{tpu_custom_call.1} parent=1 // pred_check
      _
    $region27: #{tpu_custom_call.1} parent=1 // pred_check_branch
      %156 = sbr.rel (0) target = $region29
    $region28: #{tpu_custom_call.1} parent=1 // pred_region
      %158 = vsyncadd [#allocation6], 0
      %s159 = sshll.u32 [#allocation9], 4
      %s160 = int_to_ptr.vmem [resolvable:$true] %s159
      %s161 = sshll.u32 %s2, 4
      %s162 = int_to_ptr.hbm [resolvable:$true] %s161
      %167 = dma.vmem_to_hbm [thread:$0]  %s160, 256, %s162, [#allocation6], 128, 128, 8
    $region29: #{tpu_custom_call.1} parent=1 // pred_fallthru
      _
    // Predicated region
    $region30: #{tpu_custom_call.1} parent=1 // pred_check
      _
    $region31: #{tpu_custom_call.1} parent=1 // pred_check_branch
      %169 = sbr.rel (0) target = $region33
    $region32: #{tpu_custom_call.1} parent=1 // pred_region
      _
    $region33: #{tpu_custom_call.1} parent=1 // pred_fallthru
      _
    // Predicated region
    $region34: #{tpu_custom_call.1} parent=1 // pred_check
      _
    $region35: #{tpu_custom_call.1} parent=1 // pred_check_branch
      %171 = sbr.rel (0) target = $region37
    $region36: #{tpu_custom_call.1} parent=1 // pred_region
      %173 = dma.done [#allocation6], 256
    $region37: #{tpu_custom_call.1} parent=1 // pred_fallthru
      _
    // Predicated region
    $region38: #{tpu_custom_call.1} parent=1 // pred_check
      _
    $region39: #{tpu_custom_call.1} parent=1 // pred_check_branch
      %175 = sbr.rel (0) target = $region41
    $region40: #{tpu_custom_call.1} parent=1 // pred_region
      _
    $region41: #{tpu_custom_call.1} parent=1 // pred_fallthru
      _
    %176 = vsyncpa [#allocation5], 1
    %177 = vsyncpa [#allocation8], 1
    %178 = vsyncpa [#allocation6], 1

</llo_original>
